<compile_context>
chip_gen: v6e
topology: v6e:2x2x1
jax: 0.10.0
libtpu: 0.0.40
codegen_flags: <defaults>
</compile_context>

<pallas_src>
from math import gcd

import jax
import jax.numpy as jnp
from jax.experimental import pallas as pl
from jax.experimental.pallas import tpu as pltpu


def _round_up(x, m):
    return -(-x // m) * m


def _time2vec_kernel(t_ref, rw_ref, b_ref, m_ref, o_ref):
    # t_ref: (tm, Gp)   rw_ref: (Gp, L)   b_ref/m_ref: (1, L)   o_ref: (tm, L)
    z = jnp.dot(t_ref[...], rw_ref[...],
                preferred_element_type=jnp.float32,
                precision=jax.lax.Precision.HIGHEST) + b_ref[...]     # (tm, L)
    # Predicated store: linear-term columns keep z, the rest get sin(z).
    lin = jnp.broadcast_to(m_ref[...], z.shape) != 0.0
    o_ref[...] = jnp.where(lin, z, jnp.sin(z)).astype(o_ref.dtype)


def time2vec(t, w0, b0, W, B, *, tm=None, out_dtype=jnp.float32):
    """t: (batch, seq, 1) float32.  Returns (batch, seq, out_features)."""
    in_features = w0.shape[0]
    assert in_features == 1, "Time2Vec forward broadcast requires in_features == 1"
    assert t.shape[-1] == in_features
    K = W.shape[1] + 1                       # out_features
    batch, seq, _ = t.shape
    n = batch * seq

    # --- packed lane-dense layout -------------------------------------------
    # Pad K to a multiple of 8 (for K < 128) so G = 128/gcd(Kp,128) stays <= 16;
    # pad lanes are stripped in the epilogue.
    if K >= 128:
        Kp, G = K, 1
    else:
        Kp = _round_up(K, 8)
        G = 128 // gcd(Kp, 128)
    L = G * Kp
    Gp = _round_up(G, 8)                     # contraction dim, sublane aligned

    f32 = jnp.float32
    # Packed params per K-group: col 0 = (w0, b0), cols 1..K-1 = (W, B), pad 0.
    w_pad = jnp.concatenate([w0.reshape(1, 1).astype(f32),
                             W.reshape(1, -1).astype(f32),
                             jnp.zeros((1, Kp - K), f32)], axis=1)    # (1, Kp)
    b_pad = jnp.concatenate([b0.reshape(1, 1).astype(f32),
                             B.reshape(1, -1).astype(f32),
                             jnp.zeros((1, Kp - K), f32)], axis=1)    # (1, Kp)
    b_tiled = jnp.tile(b_pad, (1, G))                                 # (1, L)
    # Block-diagonal replication matrix with weights folded in:
    #   R_w[g, g*Kp + j] = w_pad[j]   (rows >= G are zero padding)
    grp_of_col = jnp.arange(L, dtype=jnp.int32)[None, :] // Kp        # (1, L)
    row_ids = jnp.arange(Gp, dtype=jnp.int32)[:, None]                # (Gp, 1)
    R_w = (grp_of_col == row_ids).astype(f32) * jnp.tile(w_pad, (1, G))  # (Gp, L)
    # Linear-term column mask (1.0 where col % Kp == 0), tiny constant input.
    lin_mask = (jnp.arange(L, dtype=jnp.int32) % Kp == 0).astype(f32)[None, :]

    # --- tile sizing ----------------------------------------------------------
    out_itemsize = jnp.dtype(out_dtype).itemsize
    row_align = max(8, 32 // out_itemsize)   # 8 rows for f32, 16 for bf16
    n_g = pl.cdiv(n, G)                      # packed rows

    # Pallas double-buffers the output tile and the t tile; the t tile occupies
    # one (8,128) VMEM lane-tile per 8 rows regardless of Gp <= 128.
    per_row_vmem = 2 * L * out_itemsize + 2 * 128 * 4
    tm_cap = max(row_align, ((16 << 20) // per_row_vmem) // row_align * row_align)
    tm_all = _round_up(n_g, row_align)       # everything in a single step
    # Aim for >= ~8 grid steps (megacore sharding / pipeline overlap) but keep
    # each output tile >= ~1 MiB so the ~0.35 us/step overhead stays small.
    split_floor = max(row_align,
                      _round_up((1 << 20) // (L * out_itemsize), row_align))
    tm_split = max(split_floor, _round_up(pl.cdiv(n_g, 8), row_align))
    if tm is None:
        tm_eff = min(tm_cap, tm_all, tm_split)
    else:
        tm_eff = min(max(row_align, (tm // row_align) * row_align), tm_cap, tm_all)
    grid = pl.cdiv(n_g, tm_eff)              # ragged last block handled by Pallas

    # --- pack t lane-dense ----------------------------------------------------
    t_flat = t.reshape(-1).astype(f32)
    row_pad = n_g * G - n                    # at most G-1 <= 15 padded scalars
    if row_pad:
        t_flat = jnp.pad(t_flat, (0, row_pad))
    t_packed = t_flat.reshape(n_g, G)
    if Gp > G:
        t_packed = jnp.pad(t_packed, ((0, 0), (0, Gp - G)))

    out_packed = pl.pallas_call(
        _time2vec_kernel,
        out_shape=jax.ShapeDtypeStruct((n_g, L), out_dtype),
        grid_spec=pltpu.PrefetchScalarGridSpec(
            num_scalar_prefetch=0,
            grid=(grid,),
            in_specs=[
                pl.BlockSpec((tm_eff, Gp), lambda i: (i, 0)),
                pl.BlockSpec((Gp, L), lambda i: (0, 0)),
                pl.BlockSpec((1, L), lambda i: (0, 0)),
                pl.BlockSpec((1, L), lambda i: (0, 0)),
            ],
            out_specs=pl.BlockSpec((tm_eff, L), lambda i: (i, 0)),
        ),
        compiler_params=pltpu.CompilerParams(
            dimension_semantics=("parallel",),
            vmem_limit_bytes=32 * 1024 * 1024,   # v5e default scoped limit is 16 MiB
        ),
    )(t_packed, R_w, b_tiled, lin_mask)

    # (n_g, L) and (n_g*G, Kp) share the same row-major HBM layout -> free reshape.
    out = out_packed.reshape(n_g * G, Kp)
    if row_pad or Kp != K:
        # One extra HBM pass, only for ragged n or padded K.
        out = out[:n, :K]
    return out.reshape(batch, seq, K)


def time2vec_reference(t, w0, b0, W, B):
    # Elementwise reference (in_features == 1), exact in f32.
    v1 = w0.reshape(1, 1, 1) * t + b0.reshape(1, 1, 1)               # (B, S, 1)
    v2 = jnp.sin(t * W.reshape(1, 1, -1) + B.reshape(1, 1, -1))      # (B, S, K-1)
    return jnp.concatenate([v1, v2], axis=-1)


if __name__ == "__main__":
    key = jax.random.PRNGKey(0)
    k_t, k_w0, k_b0, k_W, k_B = jax.random.split(key, 5)

    in_features = 1
    out_features = 32
    batch, seq = 2, 8

    w0 = jax.random.normal(k_w0, (in_features, 1), dtype=jnp.float32)
    b0 = jax.random.normal(k_b0, (1,), dtype=jnp.float32)
    W = jax.random.normal(k_W, (in_features, out_features - 1), dtype=jnp.float32)
    B = jax.random.normal(k_B, (out_features - 1,), dtype=jnp.float32)
    t = jax.random.normal(k_t, (batch, seq, in_features), dtype=jnp.float32)

    out = jax.block_until_ready(time2vec(t, w0, b0, W, B))
    ref = time2vec_reference(t, w0, b0, W, B)
    assert out.shape == (batch, seq, out_features)
    assert jnp.allclose(out, ref, atol=1e-5, rtol=1e-5)

    # Ragged row count + multi-step grid (ragged last block, no tile padding).
    t2 = jax.random.normal(k_t, (3, 101, in_features), dtype=jnp.float32)
    out2 = jax.block_until_ready(time2vec(t2, w0, b0, W, B, tm=16))
    ref2 = time2vec_reference(t2, w0, b0, W, B)
    assert out2.shape == (3, 101, out_features)
    assert jnp.allclose(out2, ref2, atol=1e-5, rtol=1e-5)

    # Odd out_features -> padded-K path (Kp=16, G=8) with pad-lane stripping.
    K3 = 13
    W3 = jax.random.normal(k_W, (in_features, K3 - 1), dtype=jnp.float32)
    B3 = jax.random.normal(k_B, (K3 - 1,), dtype=jnp.float32)
    t3 = jax.random.normal(k_t, (2, 9, in_features), dtype=jnp.float32)
    out3 = jax.block_until_ready(time2vec(t3, w0, b0, W3, B3))
    ref3 = time2vec_reference(t3, w0, b0, W3, B3)
    assert out3.shape == (2, 9, K3)
    assert jnp.allclose(out3, ref3, atol=1e-5, rtol=1e-5)

    print("KERNEL_OK")
</pallas_src>

<mosaic_0001>
module attributes {stable_mosaic.version = 11 : i64} {
  func.func @_time2vec_kernel(%arg0: i32, %arg1: memref<8x8xf32, #tpu.memory_space<vmem>>, %arg2: memref<8x128xf32, #tpu.memory_space<vmem>>, %arg3: memref<1x128xf32, #tpu.memory_space<vmem>>, %arg4: memref<1x128xf32, #tpu.memory_space<vmem>>, %arg5: memref<8x128xf32, #tpu.memory_space<vmem>>) attributes {dimension_semantics = [#tpu.dimension_semantics<parallel>], iteration_bounds = array<i64: 1>, scalar_prefetch = 0 : i64, scratch_operands = 0 : i64, tpu.core_type = #tpu.core_type<tc>, window_params = [{transform_indices = @transform_0, window_bounds = array<i64: 8, 8>}, {pipeline_mode = #tpu.pipeline_mode<synchronous>, transform_indices = @transform_1, window_bounds = array<i64: 8, 128>}, {pipeline_mode = #tpu.pipeline_mode<synchronous>, transform_indices = @transform_2, window_bounds = array<i64: 1, 128>}, {pipeline_mode = #tpu.pipeline_mode<synchronous>, transform_indices = @transform_3, window_bounds = array<i64: 1, 128>}, {transform_indices = @transform_4, window_bounds = array<i64: 8, 128>}]} {
    %c0 = arith.constant 0 : index
    %c0_0 = arith.constant 0 : index
    %0 = vector.load %arg1[%c0, %c0_0] : memref<8x8xf32, #tpu.memory_space<vmem>>, vector<8x8xf32>
    %c0_1 = arith.constant 0 : index
    %c0_2 = arith.constant 0 : index
    %1 = vector.load %arg2[%c0_1, %c0_2] : memref<8x128xf32, #tpu.memory_space<vmem>>, vector<8x128xf32>
    %cst = arith.constant dense<0.000000e+00> : vector<8x128xf32>
    %2 = tpu.matmul %0, %1, %cst {dimension_numbers = #tpu.dot_dimension_numbers<[1], [0], [0], [1], [0, 0, 1, 1], [], []>, precision = #tpu.contract_precision<fp32>} : vector<8x8xf32>, vector<8x128xf32>, vector<8x128xf32> -> vector<8x128xf32>
    %c0_3 = arith.constant 0 : index
    %c0_4 = arith.constant 0 : index
    %3 = vector.load %arg3[%c0_3, %c0_4] : memref<1x128xf32, #tpu.memory_space<vmem>>, vector<1x128xf32>
    %4 = vector.broadcast %3 : vector<1x128xf32> to vector<8x128xf32>
    %5 = arith.addf %2, %4 : vector<8x128xf32>
    %c0_5 = arith.constant 0 : index
    %c0_6 = arith.constant 0 : index
    %6 = vector.load %arg4[%c0_5, %c0_6] : memref<1x128xf32, #tpu.memory_space<vmem>>, vector<1x128xf32>
    %7 = vector.shape_cast %6 : vector<1x128xf32> to vector<1x128xf32>
    %8 = vector.broadcast %7 : vector<1x128xf32> to vector<8x128xf32>
    %cst_7 = arith.constant 0.000000e+00 : f32
    %9 = vector.broadcast %cst_7 : f32 to vector<8x128xf32>
    %10 = arith.cmpf one, %8, %9 : vector<8x128xf32>
    %11 = math.sin %5 : vector<8x128xf32>
    %12 = arith.select %10, %5, %11 : vector<8x128xi1>, vector<8x128xf32>
    %c0_8 = arith.constant 0 : index
    %c0_9 = arith.constant 0 : index
    %13 = vector.load %arg5[%c0_8, %c0_9] : memref<8x128xf32, #tpu.memory_space<vmem>>, vector<8x128xf32>
    tpu.vector_store %arg5[%c0_8, %c0_9], %12 {strides = array<i32>} : memref<8x128xf32, #tpu.memory_space<vmem>>, vector<8x128xf32>,
    return
  }
  func.func @transform_0(%arg0: i32) -> (i32, i32) {
    %c0_i32 = arith.constant 0 : i32
    %c0_i32_0 = arith.constant 0 : i32
    return %arg0, %c0_i32 : i32, i32
  }
  func.func @transform_1(%arg0: i32) -> (i32, i32) {
    %c0_i32 = arith.constant 0 : i32
    %c0_i32_0 = arith.constant 0 : i32
    %c0_i32_1 = arith.constant 0 : i32
    return %c0_i32, %c0_i32_0 : i32, i32
  }
  func.func @transform_2(%arg0: i32) -> (i32, i32) {
    %c0_i32 = arith.constant 0 : i32
    %c0_i32_0 = arith.constant 0 : i32
    %c0_i32_1 = arith.constant 0 : i32
    return %c0_i32, %c0_i32_0 : i32, i32
  }
  func.func @transform_3(%arg0: i32) -> (i32, i32) {
    %c0_i32 = arith.constant 0 : i32
    %c0_i32_0 = arith.constant 0 : i32
    %c0_i32_1 = arith.constant 0 : i32
    return %c0_i32, %c0_i32_0 : i32, i32
  }
  func.func @transform_4(%arg0: i32) -> (i32, i32) {
    %c0_i32 = arith.constant 0 : i32
    %c0_i32_0 = arith.constant 0 : i32
    return %arg0, %c0_i32 : i32, i32
  }
}

</mosaic_0001>

<llo_original>
// kernel: tpu_custom_call.1
$region0: #{tpu_custom_call.1}
  #allocation0 [shape = 'u32[]', space=smem, size = 0x4, offset = 0x4, fixed_abs, tag = 'smem constant byte address 0x4 - core index']
  #allocation1 [shape = 'u32[144,128]{1,0:T(1,128)}', space=vmem, size = 0x12000, scoped, tag = 'internal scratch']
  %s0 = inlined_call_operand.hbm [shape: f32[4,8], index: 0, kind: input, shape index: {}]
  %s1 = inlined_call_operand.hbm [shape: f32[8,128], index: 1, kind: input, shape index: {}]
  %s2 = inlined_call_operand.vmem [shape: f32[1,128], index: 2, kind: input, shape index: {}]
  %s3 = inlined_call_operand.vmem [shape: f32[1,128], index: 3, kind: input, shape index: {}]
  %s4 = inlined_call_operand.hbm [shape: f32[4,128], index: 4, kind: output, shape index: {}]
  %s5 = sld [smem:[#allocation0]]
  $region34: #{tpu_custom_call.1} parent=0
    _
  %s7 = ssub.s32 1, %s5
  %s8 = scalar_select 0, %s7, %s5
  $region1: #{tpu_custom_call.1} parent=0
    #allocation2 [shape = 'u8[4096]{0}', space=vmem, size = 0x1000, scoped, tag = 'input window, operand 0, single buffered']
    #allocation3 [shape = 's32[1]{0}', space=sflag, size = 0x4, scoped, tag = 'scoped memory for tpu_custom_call.1']
    #allocation4 [shape = 's32[1]{0}', space=sflag, size = 0x4, scoped, tag = 'scoped memory for tpu_custom_call.1']
    #allocation5 [shape = 'u8[4096]{0}', space=vmem, size = 0x1000, scoped, tag = 'input window, operand 1, single buffered']
    #allocation6 [shape = 's32[1]{0}', space=sflag, size = 0x4, scoped, tag = 'scoped memory for tpu_custom_call.1']
    #allocation7 [shape = 'u8[4096]{0}', space=vmem, size = 0x1000, scoped, tag = 'output window, operand 0, single buffered']
    %9 = vsyncpa [#allocation3], 0
    %10 = vsyncpa [#allocation6], 0
    %11 = vsyncpa [#allocation4], 0
    // Predicated region
    $region2: #{tpu_custom_call.1} parent=1 // pred_check
      _
    $region3: #{tpu_custom_call.1} parent=1 // pred_check_branch
      %13 = sbr.rel (0) target = $region5
    $region4: #{tpu_custom_call.1} parent=1 // pred_region
      %s15 = ssub.s32 128, 64
      %16 = vsyncadd [#allocation3], %s15
      %s17 = sshll.u32 [#allocation2], 4
      %s18 = int_to_ptr.vmem [resolvable:$true] %s17
      %23 = dma.hbm_to_vmem [thread:$0]  %s0, 64, %s18, [#allocation3], 64, 64, 4
    $region5: #{tpu_custom_call.1} parent=1 // pred_fallthru
      _
    // Predicated region
    $region6: #{tpu_custom_call.1} parent=1 // pred_check
      _
    $region7: #{tpu_custom_call.1} parent=1 // pred_check_branch
      %25 = sbr.rel (0) target = $region9
    $region8: #{tpu_custom_call.1} parent=1 // pred_region
      %s27 = ssub.s32 128, 128
      %28 = vsyncadd [#allocation6], %s27
      %s30 = sshll.u32 [#allocation5], 4
      %s31 = int_to_ptr.vmem [resolvable:$true] %s30
      %33 = dma.hbm_to_vmem [thread:$0]  %s1, 128, %s31, [#allocation6]
    $region9: #{tpu_custom_call.1} parent=1 // pred_fallthru
      _
    // Predicated region
    $region10: #{tpu_custom_call.1} parent=1 // pred_check
      _
    $region11: #{tpu_custom_call.1} parent=1 // pred_check_branch
      %35 = sbr.rel (0) target = $region13
    $region12: #{tpu_custom_call.1} parent=1 // pred_region
      _
    $region13: #{tpu_custom_call.1} parent=1 // pred_fallthru
      _
    // Predicated region
    $region14: #{tpu_custom_call.1} parent=1 // pred_check
      _
    $region15: #{tpu_custom_call.1} parent=1 // pred_check_branch
      %37 = sbr.rel (0) target = $region17
    $region16: #{tpu_custom_call.1} parent=1 // pred_region
      _
    $region17: #{tpu_custom_call.1} parent=1 // pred_fallthru
      _
    // Predicated region
    $region18: #{tpu_custom_call.1} parent=1 // pred_check
      _
    $region19: #{tpu_custom_call.1} parent=1 // pred_check_branch
      %39 = sbr.rel (0) target = $region21
    $region20: #{tpu_custom_call.1} parent=1 // pred_region
      %40 = dma.done [#allocation3], 128
    $region21: #{tpu_custom_call.1} parent=1 // pred_fallthru
      _
    // Predicated region
    $region22: #{tpu_custom_call.1} parent=1 // pred_check
      _
    $region23: #{tpu_custom_call.1} parent=1 // pred_check_branch
      %42 = sbr.rel (0) target = $region25
    $region24: #{tpu_custom_call.1} parent=1 // pred_region
      %43 = dma.done [#allocation6], 128
    $region25: #{tpu_custom_call.1} parent=1 // pred_fallthru
      _
    %v44 = vld [vmem:[#allocation2] sm:$0xff]
    %v45 = vld [vmem:[#allocation5] sm:$0xff]
    %v46 = vld [vmem:[%s2] sm:$0x1]
    %v48 = vlaneseq
    %v49 = vshrl.u32 %v48, 7
    %v50 = vsub.s32 0, %v49
    %v51 = vrot.slane %v46, %v50
    %vm53 = vcmask 64512
    %v55 = vsel %vm53, %v44, 0
    %57 = vmatprep.subr.mxu0 0.0
    %58 = vmatpush1.msra.mxu0 0.0
    %59 = vmatprep.subr.mxu0 0.0
    %60 = vmatpush1.msra.mxu0 0.0
    %61 = vmatprep.subr.mxu0 0.0
    %62 = vmatpush1.msra.mxu0 0.0
    %63 = vmatprep.subr.mxu0 0.0
    %64 = vmatpush1.msra.mxu0 0.0
    %65 = vmatprep.subr.mxu0 0.0
    %66 = vmatpush1.msra.mxu0 0.0
    %67 = vmatprep.subr.mxu0 0.0
    %68 = vmatpush1.msra.mxu0 0.0
    %69 = vmatprep.subr.mxu0 0.0
    %70 = vmatpush1.msra.mxu0 0.0
    %71 = vmatprep.subr.mxu0 0.0
    %72 = vmatpush1.msra.mxu0 0.0
    %73 = vmatprep.subr.mxu0 0.0
    %74 = vmatpush1.msra.mxu0 0.0
    %75 = vmatprep.subr.mxu0 0.0
    %76 = vmatpush1.msra.mxu0 0.0
    %77 = vmatprep.subr.mxu0 0.0
    %78 = vmatpush1.msra.mxu0 0.0
    %79 = vmatprep.subr.mxu0 0.0
    %80 = vmatpush1.msra.mxu0 0.0
    %81 = vmatprep.subr.mxu0 0.0
    %82 = vmatpush1.msra.mxu0 0.0
    %83 = vmatprep.subr.mxu0 0.0
    %84 = vmatpush1.msra.mxu0 0.0
    %85 = vmatprep.subr.mxu0 0.0
    %86 = vmatpush1.msra.mxu0 0.0
    %87 = vmatprep.subr.mxu0 0.0
    %v88 = vand.u32 %v45, 4294901760
    %89 = vmatpush1.msra.mxu0 %v88
    %90 = vmatprep.subr.mxu0 0.0
    %91 = vmatpush2.msra.mxu0 0.0
    %92 = vmatprep.subr.mxu0 0.0
    %93 = vmatpush2.msra.mxu0 0.0
    %94 = vmatprep.subr.mxu0 0.0
    %95 = vmatpush2.msra.mxu0 0.0
    %96 = vmatprep.subr.mxu0 0.0
    %97 = vmatpush2.msra.mxu0 0.0
    %98 = vmatprep.subr.mxu0 0.0
    %99 = vmatpush2.msra.mxu0 0.0
    %100 = vmatprep.subr.mxu0 0.0
    %101 = vmatpush2.msra.mxu0 0.0
    %102 = vmatprep.subr.mxu0 0.0
    %103 = vmatpush2.msra.mxu0 0.0
    %104 = vmatprep.subr.mxu0 0.0
    %105 = vmatpush2.msra.mxu0 0.0
    %106 = vmatprep.subr.mxu0 0.0
    %107 = vmatpush2.msra.mxu0 0.0
    %108 = vmatprep.subr.mxu0 0.0
    %109 = vmatpush2.msra.mxu0 0.0
    %110 = vmatprep.subr.mxu0 0.0
    %111 = vmatpush2.msra.mxu0 0.0
    %112 = vmatprep.subr.mxu0 0.0
    %113 = vmatpush2.msra.mxu0 0.0
    %114 = vmatprep.subr.mxu0 0.0
    %115 = vmatpush2.msra.mxu0 0.0
    %116 = vmatprep.subr.mxu0 0.0
    %117 = vmatpush2.msra.mxu0 0.0
    %118 = vmatprep.subr.mxu0 0.0
    %119 = vmatpush2.msra.mxu0 0.0
    %120 = vmatprep.subr.mxu0 0.0
    %121 = vmatpush2.msra.mxu0 0.0
    %122 = vmatprep.mubr.f32.mxu0 0.0
    %v123 = vand.u32 %v55, 4294901760
    %v124 = vsub.f32 %v55, %v123
    %v125 = vand.u32 %v124, 4294901760
    %v126 = vsub.f32 %v124, %v125
    %v127 = vand.u32 %v126, 4294901760
    %128 = vmatmul.mubr.f32.gmra.mxu0 %v127
    %v129 = vpop.f32.mrf.mxu0
    %v130 = vadd.f32 %v51, %v129
    %v131 = vpop.f32.mrf.mxu0
    %132 = vdwg.mxu0
    %133 = vmatprep.subr.mxu0 0.0
    %134 = vmatpush1.msra.mxu0 0.0
    %135 = vmatprep.subr.mxu0 0.0
    %136 = vmatpush1.msra.mxu0 0.0
    %137 = vmatprep.subr.mxu0 0.0
    %138 = vmatpush1.msra.mxu0 0.0
    %139 = vmatprep.subr.mxu0 0.0
    %140 = vmatpush1.msra.mxu0 0.0
    %141 = vmatprep.subr.mxu0 0.0
    %142 = vmatpush1.msra.mxu0 0.0
    %143 = vmatprep.subr.mxu0 0.0
    %144 = vmatpush1.msra.mxu0 0.0
    %145 = vmatprep.subr.mxu0 0.0
    %146 = vmatpush1.msra.mxu0 0.0
    %147 = vmatprep.subr.mxu0 0.0
    %148 = vmatpush1.msra.mxu0 0.0
    %149 = vmatprep.subr.mxu0 0.0
    %150 = vmatpush1.msra.mxu0 0.0
    %151 = vmatprep.subr.mxu0 0.0
    %152 = vmatpush1.msra.mxu0 0.0
    %153 = vmatprep.subr.mxu0 0.0
    %154 = vmatpush1.msra.mxu0 0.0
    %155 = vmatprep.subr.mxu0 0.0
    %156 = vmatpush1.msra.mxu0 0.0
    %157 = vmatprep.subr.mxu0 0.0
    %158 = vmatpush1.msra.mxu0 0.0
    %159 = vmatprep.subr.mxu0 0.0
    %160 = vmatpush1.msra.mxu0 0.0
    %161 = vmatprep.subr.mxu0 0.0
    %162 = vmatpush1.msra.mxu0 0.0
    %163 = vmatprep.subr.mxu0 0.0
    %v164 = vand.u32 %v45, 4294901760
    %v165 = vsub.f32 %v45, %v164
    %v166 = vand.u32 %v165, 4294901760
    %v167 = vsub.f32 %v165, %v166
    %v168 = vand.u32 %v167, 4294901760
    %169 = vmatpush1.msra.mxu0 %v168
    %170 = vmatprep.subr.mxu0 0.0
    %171 = vmatpush2.msra.mxu0 0.0
    %172 = vmatprep.subr.mxu0 0.0
    %173 = vmatpush2.msra.mxu0 0.0
    %174 = vmatprep.subr.mxu0 0.0
    %175 = vmatpush2.msra.mxu0 0.0
    %176 = vmatprep.subr.mxu0 0.0
    %177 = vmatpush2.msra.mxu0 0.0
    %178 = vmatprep.subr.mxu0 0.0
    %179 = vmatpush2.msra.mxu0 0.0
    %180 = vmatprep.subr.mxu0 0.0
    %181 = vmatpush2.msra.mxu0 0.0
    %182 = vmatprep.subr.mxu0 0.0
    %183 = vmatpush2.msra.mxu0 0.0
    %184 = vmatprep.subr.mxu0 0.0
    %185 = vmatpush2.msra.mxu0 0.0
    %186 = vmatprep.subr.mxu0 0.0
    %187 = vmatpush2.msra.mxu0 0.0
    %188 = vmatprep.subr.mxu0 0.0
    %189 = vmatpush2.msra.mxu0 0.0
    %190 = vmatprep.subr.mxu0 0.0
    %191 = vmatpush2.msra.mxu0 0.0
    %192 = vmatprep.subr.mxu0 0.0
    %193 = vmatpush2.msra.mxu0 0.0
    %194 = vmatprep.subr.mxu0 0.0
    %195 = vmatpush2.msra.mxu0 0.0
    %196 = vmatprep.subr.mxu0 0.0
    %197 = vmatpush2.msra.mxu0 0.0
    %198 = vmatprep.subr.mxu0 0.0
    %199 = vmatpush2.msra.mxu0 0.0
    %200 = vmatprep.subr.mxu0 0.0
    %201 = vmatpush2.msra.mxu0 0.0
    %202 = vmatprep.mubr.f32.mxu0 0.0
    %v203 = vand.u32 %v55, 4294901760
    %204 = vmatmul.mubr.f32.gmra.mxu0 %v203
    %v205 = vpop.f32.mrf.mxu0
    %v206 = vadd.f32 %v130, %v205
    %v207 = vpop.f32.mrf.mxu0
    %208 = vdwg.mxu0
    %209 = vmatprep.subr.mxu0 0.0
    %210 = vmatpush1.msra.mxu0 0.0
    %211 = vmatprep.subr.mxu0 0.0
    %212 = vmatpush1.msra.mxu0 0.0
    %213 = vmatprep.subr.mxu0 0.0
    %214 = vmatpush1.msra.mxu0 0.0
    %215 = vmatprep.subr.mxu0 0.0
    %216 = vmatpush1.msra.mxu0 0.0
    %217 = vmatprep.subr.mxu0 0.0
    %218 = vmatpush1.msra.mxu0 0.0
    %219 = vmatprep.subr.mxu0 0.0
    %220 = vmatpush1.msra.mxu0 0.0
    %221 = vmatprep.subr.mxu0 0.0
    %222 = vmatpush1.msra.mxu0 0.0
    %223 = vmatprep.subr.mxu0 0.0
    %224 = vmatpush1.msra.mxu0 0.0
    %225 = vmatprep.subr.mxu0 0.0
    %226 = vmatpush1.msra.mxu0 0.0
    %227 = vmatprep.subr.mxu0 0.0
    %228 = vmatpush1.msra.mxu0 0.0
    %229 = vmatprep.subr.mxu0 0.0
    %230 = vmatpush1.msra.mxu0 0.0
    %231 = vmatprep.subr.mxu0 0.0
    %232 = vmatpush1.msra.mxu0 0.0
    %233 = vmatprep.subr.mxu0 0.0
    %234 = vmatpush1.msra.mxu0 0.0
    %235 = vmatprep.subr.mxu0 0.0
    %236 = vmatpush1.msra.mxu0 0.0
    %237 = vmatprep.subr.mxu0 0.0
    %238 = vmatpush1.msra.mxu0 0.0
    %239 = vmatprep.subr.mxu0 0.0
    %v240 = vand.u32 %v45, 4294901760
    %v241 = vsub.f32 %v45, %v240
    %242 = vmatpush1.msra.mxu0 %v241
    %243 = vmatprep.subr.mxu0 0.0
    %244 = vmatpush2.msra.mxu0 0.0
    %245 = vmatprep.subr.mxu0 0.0
    %246 = vmatpush2.msra.mxu0 0.0
    %247 = vmatprep.subr.mxu0 0.0
    %248 = vmatpush2.msra.mxu0 0.0
    %249 = vmatprep.subr.mxu0 0.0
    %250 = vmatpush2.msra.mxu0 0.0
    %251 = vmatprep.subr.mxu0 0.0
    %252 = vmatpush2.msra.mxu0 0.0
    %253 = vmatprep.subr.mxu0 0.0
    %254 = vmatpush2.msra.mxu0 0.0
    %255 = vmatprep.subr.mxu0 0.0
    %256 = vmatpush2.msra.mxu0 0.0
    %257 = vmatprep.subr.mxu0 0.0
    %258 = vmatpush2.msra.mxu0 0.0
    %259 = vmatprep.subr.mxu0 0.0
    %260 = vmatpush2.msra.mxu0 0.0
    %261 = vmatprep.subr.mxu0 0.0
    %262 = vmatpush2.msra.mxu0 0.0
    %263 = vmatprep.subr.mxu0 0.0
    %264 = vmatpush2.msra.mxu0 0.0
    %265 = vmatprep.subr.mxu0 0.0
    %266 = vmatpush2.msra.mxu0 0.0
    %267 = vmatprep.subr.mxu0 0.0
    %268 = vmatpush2.msra.mxu0 0.0
    %269 = vmatprep.subr.mxu0 0.0
    %270 = vmatpush2.msra.mxu0 0.0
    %271 = vmatprep.subr.mxu0 0.0
    %272 = vmatpush2.msra.mxu0 0.0
    %273 = vmatprep.subr.mxu0 0.0
    %274 = vmatpush2.msra.mxu0 0.0
    %275 = vmatprep.mubr.f32.mxu0 0.0
    %v276 = vand.u32 %v55, 4294901760
    %v277 = vsub.f32 %v55, %v276
    %278 = vmatmul.mubr.f32.gmra.mxu0 %v277
    %v279 = vpop.f32.mrf.mxu0
    %v280 = vadd.f32 %v206, %v279
    %v281 = vpop.f32.mrf.mxu0
    %282 = vdwg.mxu0
    %283 = vmatprep.subr.mxu0 0.0
    %284 = vmatpush1.msra.mxu0 0.0
    %285 = vmatprep.subr.mxu0 0.0
    %286 = vmatpush1.msra.mxu0 0.0
    %287 = vmatprep.subr.mxu0 0.0
    %288 = vmatpush1.msra.mxu0 0.0
    %289 = vmatprep.subr.mxu0 0.0
    %290 = vmatpush1.msra.mxu0 0.0
    %291 = vmatprep.subr.mxu0 0.0
    %292 = vmatpush1.msra.mxu0 0.0
    %293 = vmatprep.subr.mxu0 0.0
    %294 = vmatpush1.msra.mxu0 0.0
    %295 = vmatprep.subr.mxu0 0.0
    %296 = vmatpush1.msra.mxu0 0.0
    %297 = vmatprep.subr.mxu0 0.0
    %298 = vmatpush1.msra.mxu0 0.0
    %299 = vmatprep.subr.mxu0 0.0
    %300 = vmatpush1.msra.mxu0 0.0
    %301 = vmatprep.subr.mxu0 0.0
    %302 = vmatpush1.msra.mxu0 0.0
    %303 = vmatprep.subr.mxu0 0.0
    %304 = vmatpush1.msra.mxu0 0.0
    %305 = vmatprep.subr.mxu0 0.0
    %306 = vmatpush1.msra.mxu0 0.0
    %307 = vmatprep.subr.mxu0 0.0
    %308 = vmatpush1.msra.mxu0 0.0
    %309 = vmatprep.subr.mxu0 0.0
    %310 = vmatpush1.msra.mxu0 0.0
    %311 = vmatprep.subr.mxu0 0.0
    %312 = vmatpush1.msra.mxu0 0.0
    %313 = vmatprep.subr.mxu0 0.0
    %v314 = vand.u32 %v45, 4294901760
    %315 = vmatpush1.msra.mxu0 %v314
    %316 = vmatprep.subr.mxu0 0.0
    %317 = vmatpush2.msra.mxu0 0.0
    %318 = vmatprep.subr.mxu0 0.0
    %319 = vmatpush2.msra.mxu0 0.0
    %320 = vmatprep.subr.mxu0 0.0
    %321 = vmatpush2.msra.mxu0 0.0
    %322 = vmatprep.subr.mxu0 0.0
    %323 = vmatpush2.msra.mxu0 0.0
    %324 = vmatprep.subr.mxu0 0.0
    %325 = vmatpush2.msra.mxu0 0.0
    %326 = vmatprep.subr.mxu0 0.0
    %327 = vmatpush2.msra.mxu0 0.0
    %328 = vmatprep.subr.mxu0 0.0
    %329 = vmatpush2.msra.mxu0 0.0
    %330 = vmatprep.subr.mxu0 0.0
    %331 = vmatpush2.msra.mxu0 0.0
    %332 = vmatprep.subr.mxu0 0.0
    %333 = vmatpush2.msra.mxu0 0.0
    %334 = vmatprep.subr.mxu0 0.0
    %335 = vmatpush2.msra.mxu0 0.0
    %336 = vmatprep.subr.mxu0 0.0
    %337 = vmatpush2.msra.mxu0 0.0
    %338 = vmatprep.subr.mxu0 0.0
    %339 = vmatpush2.msra.mxu0 0.0
    %340 = vmatprep.subr.mxu0 0.0
    %341 = vmatpush2.msra.mxu0 0.0
    %342 = vmatprep.subr.mxu0 0.0
    %343 = vmatpush2.msra.mxu0 0.0
    %344 = vmatprep.subr.mxu0 0.0
    %345 = vmatpush2.msra.mxu0 0.0
    %346 = vmatprep.subr.mxu0 0.0
    %347 = vmatpush2.msra.mxu0 0.0
    %348 = vmatprep.mubr.f32.mxu0 0.0
    %v349 = vand.u32 %v55, 4294901760
    %v350 = vsub.f32 %v55, %v349
    %v351 = vand.u32 %v350, 4294901760
    %352 = vmatmul.mubr.f32.gmra.mxu0 %v351
    %v353 = vpop.f32.mrf.mxu0
    %v354 = vadd.f32 %v280, %v353
    %v355 = vpop.f32.mrf.mxu0
    %356 = vdwg.mxu0
    %357 = vmatprep.subr.mxu0 0.0
    %358 = vmatpush1.msra.mxu0 0.0
    %359 = vmatprep.subr.mxu0 0.0
    %360 = vmatpush1.msra.mxu0 0.0
    %361 = vmatprep.subr.mxu0 0.0
    %362 = vmatpush1.msra.mxu0 0.0
    %363 = vmatprep.subr.mxu0 0.0
    %364 = vmatpush1.msra.mxu0 0.0
    %365 = vmatprep.subr.mxu0 0.0
    %366 = vmatpush1.msra.mxu0 0.0
    %367 = vmatprep.subr.mxu0 0.0
    %368 = vmatpush1.msra.mxu0 0.0
    %369 = vmatprep.subr.mxu0 0.0
    %370 = vmatpush1.msra.mxu0 0.0
    %371 = vmatprep.subr.mxu0 0.0
    %372 = vmatpush1.msra.mxu0 0.0
    %373 = vmatprep.subr.mxu0 0.0
    %374 = vmatpush1.msra.mxu0 0.0
    %375 = vmatprep.subr.mxu0 0.0
    %376 = vmatpush1.msra.mxu0 0.0
    %377 = vmatprep.subr.mxu0 0.0
    %378 = vmatpush1.msra.mxu0 0.0
    %379 = vmatprep.subr.mxu0 0.0
    %380 = vmatpush1.msra.mxu0 0.0
    %381 = vmatprep.subr.mxu0 0.0
    %382 = vmatpush1.msra.mxu0 0.0
    %383 = vmatprep.subr.mxu0 0.0
    %384 = vmatpush1.msra.mxu0 0.0
    %385 = vmatprep.subr.mxu0 0.0
    %386 = vmatpush1.msra.mxu0 0.0
    %387 = vmatprep.subr.mxu0 0.0
    %v388 = vand.u32 %v45, 4294901760
    %v389 = vsub.f32 %v45, %v388
    %v390 = vand.u32 %v389, 4294901760
    %391 = vmatpush1.msra.mxu0 %v390
    %392 = vmatprep.subr.mxu0 0.0
    %393 = vmatpush2.msra.mxu0 0.0
    %394 = vmatprep.subr.mxu0 0.0
    %395 = vmatpush2.msra.mxu0 0.0
    %396 = vmatprep.subr.mxu0 0.0
    %397 = vmatpush2.msra.mxu0 0.0
    %398 = vmatprep.subr.mxu0 0.0
    %399 = vmatpush2.msra.mxu0 0.0
    %400 = vmatprep.subr.mxu0 0.0
    %401 = vmatpush2.msra.mxu0 0.0
    %402 = vmatprep.subr.mxu0 0.0
    %403 = vmatpush2.msra.mxu0 0.0
    %404 = vmatprep.subr.mxu0 0.0
    %405 = vmatpush2.msra.mxu0 0.0
    %406 = vmatprep.subr.mxu0 0.0
    %407 = vmatpush2.msra.mxu0 0.0
    %408 = vmatprep.subr.mxu0 0.0
    %409 = vmatpush2.msra.mxu0 0.0
    %410 = vmatprep.subr.mxu0 0.0
    %411 = vmatpush2.msra.mxu0 0.0
    %412 = vmatprep.subr.mxu0 0.0
    %413 = vmatpush2.msra.mxu0 0.0
    %414 = vmatprep.subr.mxu0 0.0
    %415 = vmatpush2.msra.mxu0 0.0
    %416 = vmatprep.subr.mxu0 0.0
    %417 = vmatpush2.msra.mxu0 0.0
    %418 = vmatprep.subr.mxu0 0.0
    %419 = vmatpush2.msra.mxu0 0.0
    %420 = vmatprep.subr.mxu0 0.0
    %421 = vmatpush2.msra.mxu0 0.0
    %422 = vmatprep.subr.mxu0 0.0
    %423 = vmatpush2.msra.mxu0 0.0
    %424 = vmatprep.mubr.f32.mxu0 0.0
    %v425 = vand.u32 %v55, 4294901760
    %426 = vmatmul.mubr.f32.gmra.mxu0 %v425
    %v427 = vpop.f32.mrf.mxu0
    %v428 = vadd.f32 %v354, %v427
    %v429 = vpop.f32.mrf.mxu0
    %430 = vdwg.mxu0
    %431 = vmatprep.subr.mxu0 0.0
    %432 = vmatpush1.msra.mxu0 0.0
    %433 = vmatprep.subr.mxu0 0.0
    %434 = vmatpush1.msra.mxu0 0.0
    %435 = vmatprep.subr.mxu0 0.0
    %436 = vmatpush1.msra.mxu0 0.0
    %437 = vmatprep.subr.mxu0 0.0
    %438 = vmatpush1.msra.mxu0 0.0
    %439 = vmatprep.subr.mxu0 0.0
    %440 = vmatpush1.msra.mxu0 0.0
    %441 = vmatprep.subr.mxu0 0.0
    %442 = vmatpush1.msra.mxu0 0.0
    %443 = vmatprep.subr.mxu0 0.0
    %444 = vmatpush1.msra.mxu0 0.0
    %445 = vmatprep.subr.mxu0 0.0
    %446 = vmatpush1.msra.mxu0 0.0
    %447 = vmatprep.subr.mxu0 0.0
    %448 = vmatpush1.msra.mxu0 0.0
    %449 = vmatprep.subr.mxu0 0.0
    %450 = vmatpush1.msra.mxu0 0.0
    %451 = vmatprep.subr.mxu0 0.0
    %452 = vmatpush1.msra.mxu0 0.0
    %453 = vmatprep.subr.mxu0 0.0
    %454 = vmatpush1.msra.mxu0 0.0
    %455 = vmatprep.subr.mxu0 0.0
    %456 = vmatpush1.msra.mxu0 0.0
    %457 = vmatprep.subr.mxu0 0.0
    %458 = vmatpush1.msra.mxu0 0.0
    %459 = vmatprep.subr.mxu0 0.0
    %460 = vmatpush1.msra.mxu0 0.0
    %461 = vmatprep.subr.mxu0 0.0
    %v462 = vand.u32 %v45, 4294901760
    %463 = vmatpush1.msra.mxu0 %v462
    %464 = vmatprep.subr.mxu0 0.0
    %465 = vmatpush2.msra.mxu0 0.0
    %466 = vmatprep.subr.mxu0 0.0
    %467 = vmatpush2.msra.mxu0 0.0
    %468 = vmatprep.subr.mxu0 0.0
    %469 = vmatpush2.msra.mxu0 0.0
    %470 = vmatprep.subr.mxu0 0.0
    %471 = vmatpush2.msra.mxu0 0.0
    %472 = vmatprep.subr.mxu0 0.0
    %473 = vmatpush2.msra.mxu0 0.0
    %474 = vmatprep.subr.mxu0 0.0
    %475 = vmatpush2.msra.mxu0 0.0
    %476 = vmatprep.subr.mxu0 0.0
    %477 = vmatpush2.msra.mxu0 0.0
    %478 = vmatprep.subr.mxu0 0.0
    %479 = vmatpush2.msra.mxu0 0.0
    %480 = vmatprep.subr.mxu0 0.0
    %481 = vmatpush2.msra.mxu0 0.0
    %482 = vmatprep.subr.mxu0 0.0
    %483 = vmatpush2.msra.mxu0 0.0
    %484 = vmatprep.subr.mxu0 0.0
    %485 = vmatpush2.msra.mxu0 0.0
    %486 = vmatprep.subr.mxu0 0.0
    %487 = vmatpush2.msra.mxu0 0.0
    %488 = vmatprep.subr.mxu0 0.0
    %489 = vmatpush2.msra.mxu0 0.0
    %490 = vmatprep.subr.mxu0 0.0
    %491 = vmatpush2.msra.mxu0 0.0
    %492 = vmatprep.subr.mxu0 0.0
    %493 = vmatpush2.msra.mxu0 0.0
    %494 = vmatprep.subr.mxu0 0.0
    %495 = vmatpush2.msra.mxu0 0.0
    %496 = vmatprep.mubr.f32.mxu0 0.0
    %v497 = vand.u32 %v55, 4294901760
    %498 = vmatmul.mubr.f32.gmra.mxu0 %v497
    %v499 = vpop.f32.mrf.mxu0
    %v500 = vadd.f32 %v428, %v499
    %v501 = vpop.f32.mrf.mxu0
    %502 = vdwg.mxu0
    %v503 = vld [vmem:[%s3] sm:$0x1]
    %v505 = vlaneseq
    %v506 = vshrl.u32 %v505, 7
    %v507 = vsub.s32 0, %v506
    %v508 = vrot.slane %v503, %v507
    %vm510 = vcmp.ne.f32.partialorder %v508, 0.0
    %v511 = vand.u32 2147483647, %v500
    %vm512 = vcmp.le.f32.partialorder %v511, 0.7853982
    %vm513 = vcmp.lt.s32.totalorder %v500, 0
    %v514 = vand.u32 %v500, 2139095040
    %v515 = vshrl.u32 %v514, 23
    %v516 = vsub.s32 %v515, 127
    %v517 = vand.u32 2147483647, %v500
    %v518 = vand.u32 %v517, 8388607
    %v519 = vor.u32 %v518, 8388608
    %v520 = vsub.s32 0, %v519
    %v521 = vadd.s32 %v516, 1
    %vm522 = vcmp.gt.s32.totalorder %v521, 0
    %v523 = vsel %vm522, %v521, 0
    %v524 = vshrl.u32 %v523, 5
    %v525 = vand.u32 %v523, 31
    %v526 = vsub.s32 32, %v525
    %v527 = vshrl.u32 683565275, %v526
    %v528 = vshll.u32 683565275, %v525
    %v529 = vshrl.u32 2475754826, %v526
    %v530 = vor.u32 %v528, %v529
    %v531 = vshll.u32 2475754826, %v525
    %v532 = vshrl.u32 2131351028, %v526
    %v533 = vor.u32 %v531, %v532
    %v534 = vshll.u32 2131351028, %v525
    %v535 = vshrl.u32 2102212464, %v526
    %v536 = vor.u32 %v534, %v535
    %v537 = vshll.u32 2102212464, %v525
    %v538 = vshrl.u32 920167782, %v526
    %v539 = vor.u32 %v537, %v538
    %v540 = vshll.u32 920167782, %v525
    %v541 = vshrl.u32 1326507024, %v526
    %v542 = vor.u32 %v540, %v541
    %vm543 = vcmp.lt.s32.totalorder %v524, 1
    %vm544 = vcmp.lt.s32.totalorder %v524, 2
    %vm545 = vcmp.lt.s32.totalorder %v524, 3
    %vm546 = vcmp.lt.s32.totalorder %v524, 4
    %v547 = vsel %vm543, %v527, %v530
    %v548 = vsel %vm546, %v536, 2102212464
    %v549 = vsel %vm545, %v533, %v548
    %v550 = vsel %vm544, %v547, %v549
    %v551 = vsel %vm543, %v530, %v533
    %v552 = vsel %vm546, %v539, 920167782
    %v553 = vsel %vm545, %v536, %v552
    %v554 = vsel %vm544, %v551, %v553
    %v555 = vsel %vm543, %v533, %v536
    %v556 = vsel %vm546, %v542, 1326507024
    %v557 = vsel %vm545, %v539, %v556
    %v558 = vsel %vm544, %v555, %v557
    %v559 = vshll.u32 %v519, 8
    %v560 = vmul.u32.u64.compose %v559, %v558
    %v561 = vextract.low.u32 %v560
    %v562 = vextract.high.u32 %v560
    %v563 = vmul.u32.u64.compose %v559, %v554
    %v564 = vextract.low.u32 %v563
    %v565 = vextract.high.u32 %v563
    %v566 = vmul.u32 %v559, %v550
    %v567 = vadd.s32 %v562, %v564
    %vm568 = vc.u32 %v562, %v564
    %v569 = vadd.s32 %v565, 1
    %v570 = vsel %vm568, %v569, %v565
    %v571 = vadd.s32 %v566, %v570
    %v572 = vadd.s32 %v571, 536870912
    %v573 = vshrl.u32 %v572, 30
    %v574 = vshll.u32 %v573, 30
    %v575 = vsub.s32 %v571, %v574
    %vm576 = vcmp.lt.s32.totalorder %v575, 0
    %v577 = vsub.s32 0, %v575
    %v578 = vsel %vm576, %v577, %v575
    %v579 = vclz %v578
    %v580 = vsub.s32 %v579, 2
    %vm581 = vcmp.gt.s32.totalorder 0, %v580
    %v582 = vsel %vm581, 0, %v580
    %v583 = vsub.s32 32, %v582
    %v584 = vshll.u32 %v575, %v582
    %v585 = vshrl.u32 %v567, %v583
    %v586 = vor.u32 %v584, %v585
    %v587 = vsub.s32 4294967266, %v582
    %v588 = vadd.s32 %v587, 127
    %v589 = vshll.u32 %v588, 23
    %v590 = vor.u32 4788187, %v589
    %v591 = vand.u32 2147483647, %v590
    %v593 = vcvt.s32.f32 %v586
    %v594 = vmul.f32 %v593, %v591
    %v595 = vxor.u32 %v594, 2147483648
    %v596 = vsel %vm513, %v595, %v594
    %v597 = vsub.s32 4, %v573
    %v598 = vsel %vm513, %v597, %v573
    %v599 = vsel %vm512, %v500, %v596
    %v600 = vsel %vm512, 0, %v598
    %v601 = vcosq.f32.pop %v599
    %v602 = vsinq.f32.pop %v599
    %vm603 = vweird.f32 %v500
    %v604 = vadd.s32 %v600, 3
    %v605 = vand.u32 %v604, 3
    %vm606 = vcmp.lt.s32.totalorder %v605, 2
    %vm607 = vcmp.eq.s32.totalorder %v605, 0
    %v608 = vxor.u32 %v602, 2147483648
    %v609 = vsel %vm607, %v601, %v608
    %vm610 = vcmp.eq.s32.totalorder %v605, 2
    %v611 = vxor.u32 %v601, 2147483648
    %v612 = vsel %vm610, %v611, %v602
    %v613 = vsel %vm606, %v609, %v612
    %v614 = vsel %vm603, nan, %v613
    %v615 = vsel %vm510, %v500, %v614
    %616 = vst [vmem:[#allocation7] sm:$0xff] %v615
    // Predicated region
    $region26: #{tpu_custom_call.1} parent=1 // pred_check
      _
    $region27: #{tpu_custom_call.1} parent=1 // pred_check_branch
      %618 = sbr.rel (0) target = $region29
    $region28: #{tpu_custom_call.1} parent=1 // pred_region
      %s620 = ssub.s32 128, 64
      %621 = vsyncadd [#allocation4], %s620
      %s622 = sshll.u32 [#allocation7], 4
      %s623 = int_to_ptr.vmem [resolvable:$true] %s622
      %628 = dma.vmem_to_hbm [thread:$0]  %s623, 64, %s4, [#allocation4], 64, 64, 4
    $region29: #{tpu_custom_call.1} parent=1 // pred_fallthru
      _
    // Predicated region
    $region30: #{tpu_custom_call.1} parent=1 // pred_check
      _
    $region31: #{tpu_custom_call.1} parent=1 // pred_check_branch
      %630 = sbr.rel (0) target = $region33
    $region32: #{tpu_custom_call.1} parent=1 // pred_region
      %631 = dma.done [#allocation4], 128
    $region33: #{tpu_custom_call.1} parent=1 // pred_fallthru
      _
    %632 = vsyncpa [#allocation3], 1
    %633 = vsyncpa [#allocation6], 1
    %634 = vsyncpa [#allocation4], 1

</llo_original>
